<compile_context>
chip_gen: v7x
topology: tpu7x:2x2x1
jax: 0.10.0
libtpu: 0.0.40
codegen_flags: <defaults>
</compile_context>

<pallas_src>
import math

import jax
import jax.numpy as jnp
from jax import lax
from jax.experimental import pallas as pl
from jax.experimental.pallas import tpu as pltpu

_HALF_LOG_2PI = 0.5 * math.log(2.0 * math.pi)
_LANES = 128
_SUBLANES = 8
# 2048 rows x 128 lanes = 1 MiB/input tile (f32). Bigger tiles amortize the
# ~0.35us per-grid-step overhead; on v7x callers may pass block_rows=4096.
_DEFAULT_BLOCK_ROWS = 2048
_VMEM_LIMIT_BYTES = 32 << 20  # under physical VMEM on all generations


def _make_kernel(br, ch, total_rows, needs_mask, approx):
    """Kernel for (br, 128) blocks -> one (8, 128) partial-sum slab per block.

    br:         block rows (static, multiple of 8, <= array rows)
    ch:         chunk rows per inner-loop step (static, divides br, mult of 8)
    total_rows: valid rows of the whole (rows, 128) view (static)
    needs_mask: whether the last grid block is partial (static)
    approx:     use EUP approx reciprocal for 1/sigma
    """
    n_chunks = br // ch

    def kernel(mu_ref, sigma_ref, y_ref, out_ref):
        block_row0 = pl.program_id(0) * br

        def chunk_sum(s, acc):
            r0 = pl.multiple_of(s * ch, ch)
            # Inputs stream HBM->VMEM in native dtype; upcast in-register.
            mu = mu_ref[pl.ds(r0, ch), :].astype(jnp.float32)
            sg = sigma_ref[pl.ds(r0, ch), :].astype(jnp.float32)
            y = y_ref[pl.ds(r0, ch), :].astype(jnp.float32)

            if approx:
                # EUP vrcp on an otherwise idle slot (training-loss accuracy).
                z = (y - mu) * pl.reciprocal(sg, approx=True)
            else:
                z = (y - mu) / sg
            # Normal log-density with the -0.5*log(2*pi) constant hoisted to
            # the wrapper (subtracted once as total * _HALF_LOG_2PI).
            logp = -(jnp.log(sg) + 0.5 * (z * z))

            if needs_mask:
                rid = (block_row0 + r0
                       + lax.broadcasted_iota(jnp.int32, (ch, _LANES), 0))
                # select: garbage (NaN/Inf) from the OOB tail never propagates
                logp = jnp.where(rid < total_rows, logp, 0.0)

            # Reduce the chunk to one lane-dense vreg with plain VPU adds.
            part = jnp.sum(
                logp.reshape(ch // _SUBLANES, _SUBLANES, _LANES), axis=0)
            return acc + part

        acc0 = jnp.zeros((_SUBLANES, _LANES), jnp.float32)
        if n_chunks == 1:
            out_ref[...] = chunk_sum(0, acc0)
        else:
            out_ref[...] = lax.fori_loop(0, n_chunks, chunk_sum, acc0,
                                         unroll=min(n_chunks, 4))

    return kernel


def _logp_sum_jnp(mu_f, sigma_f, y_f):
    """Tiny wrapper-side path for the sub-128-element remainder / tiny inputs.

    Returns sum of log-densities with the -0.5*log(2*pi) constant omitted."""
    mu = mu_f.astype(jnp.float32)
    sg = sigma_f.astype(jnp.float32)
    y = y_f.astype(jnp.float32)
    z = (y - mu) / sg
    return jnp.sum(-(jnp.log(sg) + 0.5 * (z * z)))


def loglikelihood_pallas(mu, sigma, target_y, *,
                         block_rows=_DEFAULT_BLOCK_ROWS,
                         approx_reciprocal=False):
    """Normal(mu, sigma).log_prob(target_y).sum(-1).sum(-1).mean() via Pallas.

    mu, sigma, target_y: identical shapes [..., N, D]. Returns float32 scalar.
    """
    assert mu.shape == sigma.shape == target_y.shape
    assert target_y.ndim >= 2, (
        "loglikelihood expects [..., N, D] (sum over last two dims, mean over rest)")
    shape = target_y.shape
    total = math.prod(shape)
    batch = math.prod(shape[:-2])  # mean over every dim except the last two

    mu_f = jnp.ravel(mu)
    sg_f = jnp.ravel(sigma)
    y_f = jnp.ravel(target_y)

    rows = total // _LANES
    main = rows * _LANES
    tail = total - main

    partial_sum = jnp.float32(0.0)
    use_kernel = rows >= _SUBLANES

    if use_kernel:
        # Block rows: multiple of 8, no larger than the array (so only the
        # grid's last block can be partial), capped at block_rows.
        br = min(int(block_rows), (rows // _SUBLANES) * _SUBLANES)
        br = max(br, _SUBLANES)
        # Chunk rows for the register-resident inner reduce loop.
        ch = next(c for c in (64, 32, 16, 8) if br % c == 0)
        num_blocks = -(-rows // br)          # ceil
        needs_mask = (rows % br) != 0        # last block partial -> mask

        def view2d(x):
            # Prefix slice (offset 0) + reshape: no padded copies, native dtype.
            xv = x[:main] if tail else x
            return xv.reshape(rows, _LANES)

        tile_spec = pl.BlockSpec((br, _LANES), lambda i: (i, 0))
        kernel = _make_kernel(br, ch, rows, needs_mask, approx_reciprocal)

        partial = pl.pallas_call(
            kernel,
            out_shape=jax.ShapeDtypeStruct((num_blocks * _SUBLANES, _LANES),
                                           jnp.float32),
            grid_spec=pltpu.PrefetchScalarGridSpec(
                num_scalar_prefetch=0,
                grid=(num_blocks,),
                in_specs=[tile_spec, tile_spec, tile_spec],
                out_specs=pl.BlockSpec((_SUBLANES, _LANES), lambda i: (i, 0)),
            ),
            compiler_params=pltpu.CompilerParams(
                # Each grid step writes its own output slab -> fully parallel
                # (megacore-shardable on v7x when num_blocks >= 2).
                dimension_semantics=("parallel",),
                vmem_limit_bytes=_VMEM_LIMIT_BYTES,
            ),
        )(view2d(mu_f), view2d(sg_f), view2d(y_f))
        partial_sum = partial_sum + jnp.sum(partial)
    else:
        # Tiny input (< 1024 elements): everything through the jnp path.
        main = 0
        tail = total

    if tail:
        partial_sum = partial_sum + _logp_sum_jnp(
            mu_f[main:], sg_f[main:], y_f[main:])

    total_sum = partial_sum - jnp.float32(total) * jnp.float32(_HALF_LOG_2PI)
    return total_sum / jnp.float32(batch)


def loglikelihood_ref(mu, sigma, target_y):
    mu32 = mu.astype(jnp.float32)
    sg32 = sigma.astype(jnp.float32)
    y32 = target_y.astype(jnp.float32)
    logp = (-jnp.log(sg32) - _HALF_LOG_2PI
            - 0.5 * ((y32 - mu32) ** 2) / (sg32 * sg32))
    return jnp.mean(jnp.sum(jnp.sum(logp, axis=-1), axis=-1))


if __name__ == "__main__":
    key = jax.random.PRNGKey(0)

    def make_inputs(k, shape, dtype=jnp.float32):
        k_mu, k_sig, k_y = jax.random.split(k, 3)
        mu = jax.random.normal(k_mu, shape, dtype=jnp.float32)
        sigma = 0.1 + jax.nn.softplus(
            jax.random.normal(k_sig, shape, dtype=jnp.float32))
        y = jax.random.normal(k_y, shape, dtype=jnp.float32)
        return mu.astype(dtype), sigma.astype(dtype), y.astype(dtype)

    ks = jax.random.split(key, 4)

    # Case A: single block, chunked fori_loop reduce (rows=256, 4 chunks).
    mu, sg, y = make_inputs(ks[0], (2, 128, 128))
    out = jax.block_until_ready(loglikelihood_pallas(mu, sg, y))
    ref = jax.block_until_ready(loglikelihood_ref(mu, sg, y))
    assert jnp.allclose(out, ref, rtol=1e-4, atol=0.5), ("case A", out, ref)

    # Case B: same data, multi-block parallel grid (block_rows=64 -> 4 blocks).
    out_b = jax.block_until_ready(loglikelihood_pallas(mu, sg, y, block_rows=64))
    assert jnp.allclose(out_b, ref, rtol=1e-4, atol=0.5), ("case B", out_b, ref)

    # Case C: partial last block (in-kernel row mask) + sub-128 tail path.
    mu_c, sg_c, y_c = make_inputs(ks[1], (2, 33, 20))
    out_c = jax.block_until_ready(loglikelihood_pallas(mu_c, sg_c, y_c))
    ref_c = jax.block_until_ready(loglikelihood_ref(mu_c, sg_c, y_c))
    assert jnp.allclose(out_c, ref_c, rtol=1e-4, atol=0.5), ("case C", out_c, ref_c)

    # Case D: bf16 inputs streamed in native dtype, upcast in-kernel.
    mu_d, sg_d, y_d = make_inputs(ks[2], (2, 64, 64), dtype=jnp.bfloat16)
    out_d = jax.block_until_ready(loglikelihood_pallas(mu_d, sg_d, y_d, block_rows=16))
    ref_d = jax.block_until_ready(loglikelihood_ref(mu_d, sg_d, y_d))
    assert jnp.allclose(out_d, ref_d, rtol=1e-4, atol=0.5), ("case D", out_d, ref_d)

    print("KERNEL_OK")
</pallas_src>

<mosaic_0001>
module attributes {stable_mosaic.version = 11 : i64} {
  func.func @kernel(%arg0: i32, %arg1: memref<256x128xf32, #tpu.memory_space<vmem>>, %arg2: memref<256x128xf32, #tpu.memory_space<vmem>>, %arg3: memref<256x128xf32, #tpu.memory_space<vmem>>, %arg4: memref<8x128xf32, #tpu.memory_space<vmem>>) attributes {dimension_semantics = [#tpu.dimension_semantics<parallel>], iteration_bounds = array<i64: 1>, scalar_prefetch = 0 : i64, scratch_operands = 0 : i64, tpu.core_type = #tpu.core_type<tc>, window_params = [{transform_indices = @transform_0, window_bounds = array<i64: 256, 128>}, {transform_indices = @transform_1, window_bounds = array<i64: 256, 128>}, {transform_indices = @transform_2, window_bounds = array<i64: 256, 128>}, {transform_indices = @transform_3, window_bounds = array<i64: 8, 128>}]} {
    %cst = arith.constant 0.000000e+00 : f32
    %0 = vector.broadcast %cst : f32 to vector<8x128xf32>
    %c0_i32 = arith.constant 0 : i32
    %c64_i32 = arith.constant 64 : i32
    %1 = arith.muli %c0_i32, %c64_i32 : i32
    %2 = tpu.assume_multiple %1, 64 : i32
    %3 = arith.index_cast %2 : i32 to index
    %c0 = arith.constant 0 : index
    %4 = vector.load %arg1[%3, %c0] : memref<256x128xf32, #tpu.memory_space<vmem>>, vector<64x128xf32>
    %5 = arith.index_cast %2 : i32 to index
    %c0_0 = arith.constant 0 : index
    %6 = vector.load %arg2[%5, %c0_0] : memref<256x128xf32, #tpu.memory_space<vmem>>, vector<64x128xf32>
    %7 = arith.index_cast %2 : i32 to index
    %c0_1 = arith.constant 0 : index
    %8 = vector.load %arg3[%7, %c0_1] : memref<256x128xf32, #tpu.memory_space<vmem>>, vector<64x128xf32>
    %9 = arith.subf %8, %4 : vector<64x128xf32>
    %10 = arith.divf %9, %6 : vector<64x128xf32>
    %11 = math.log %6 : vector<64x128xf32>
    %12 = arith.mulf %10, %10 : vector<64x128xf32>
    %cst_2 = arith.constant 5.000000e-01 : f32
    %13 = vector.broadcast %cst_2 : f32 to vector<64x128xf32>
    %14 = arith.mulf %13, %12 : vector<64x128xf32>
    %15 = arith.addf %11, %14 : vector<64x128xf32>
    %cst_3 = arith.constant 0.000000e+00 : f32
    %16 = vector.broadcast %cst_3 : f32 to vector<64x128xf32>
    %17 = arith.subf %16, %15 : vector<64x128xf32>
    %18 = vector.shape_cast %17 : vector<64x128xf32> to vector<8x8x128xf32>
    %cst_4 = arith.constant dense<0.000000e+00> : vector<8x128xf32>
    %19 = vector.multi_reduction <add>, %18, %cst_4 [0] : vector<8x8x128xf32> to vector<8x128xf32>
    %20 = arith.addf %0, %19 : vector<8x128xf32>
    %c1_i32 = arith.constant 1 : i32
    %c64_i32_5 = arith.constant 64 : i32
    %21 = arith.muli %c1_i32, %c64_i32_5 : i32
    %22 = tpu.assume_multiple %21, 64 : i32
    %23 = arith.index_cast %22 : i32 to index
    %c0_6 = arith.constant 0 : index
    %24 = vector.load %arg1[%23, %c0_6] : memref<256x128xf32, #tpu.memory_space<vmem>>, vector<64x128xf32>
    %25 = arith.index_cast %22 : i32 to index
    %c0_7 = arith.constant 0 : index
    %26 = vector.load %arg2[%25, %c0_7] : memref<256x128xf32, #tpu.memory_space<vmem>>, vector<64x128xf32>
    %27 = arith.index_cast %22 : i32 to index
    %c0_8 = arith.constant 0 : index
    %28 = vector.load %arg3[%27, %c0_8] : memref<256x128xf32, #tpu.memory_space<vmem>>, vector<64x128xf32>
    %29 = arith.subf %28, %24 : vector<64x128xf32>
    %30 = arith.divf %29, %26 : vector<64x128xf32>
    %31 = math.log %26 : vector<64x128xf32>
    %32 = arith.mulf %30, %30 : vector<64x128xf32>
    %cst_9 = arith.constant 5.000000e-01 : f32
    %33 = vector.broadcast %cst_9 : f32 to vector<64x128xf32>
    %34 = arith.mulf %33, %32 : vector<64x128xf32>
    %35 = arith.addf %31, %34 : vector<64x128xf32>
    %cst_10 = arith.constant 0.000000e+00 : f32
    %36 = vector.broadcast %cst_10 : f32 to vector<64x128xf32>
    %37 = arith.subf %36, %35 : vector<64x128xf32>
    %38 = vector.shape_cast %37 : vector<64x128xf32> to vector<8x8x128xf32>
    %cst_11 = arith.constant dense<0.000000e+00> : vector<8x128xf32>
    %39 = vector.multi_reduction <add>, %38, %cst_11 [0] : vector<8x8x128xf32> to vector<8x128xf32>
    %40 = arith.addf %20, %39 : vector<8x128xf32>
    %c2_i32 = arith.constant 2 : i32
    %c64_i32_12 = arith.constant 64 : i32
    %41 = arith.muli %c2_i32, %c64_i32_12 : i32
    %42 = tpu.assume_multiple %41, 64 : i32
    %43 = arith.index_cast %42 : i32 to index
    %c0_13 = arith.constant 0 : index
    %44 = vector.load %arg1[%43, %c0_13] : memref<256x128xf32, #tpu.memory_space<vmem>>, vector<64x128xf32>
    %45 = arith.index_cast %42 : i32 to index
    %c0_14 = arith.constant 0 : index
    %46 = vector.load %arg2[%45, %c0_14] : memref<256x128xf32, #tpu.memory_space<vmem>>, vector<64x128xf32>
    %47 = arith.index_cast %42 : i32 to index
    %c0_15 = arith.constant 0 : index
    %48 = vector.load %arg3[%47, %c0_15] : memref<256x128xf32, #tpu.memory_space<vmem>>, vector<64x128xf32>
    %49 = arith.subf %48, %44 : vector<64x128xf32>
    %50 = arith.divf %49, %46 : vector<64x128xf32>
    %51 = math.log %46 : vector<64x128xf32>
    %52 = arith.mulf %50, %50 : vector<64x128xf32>
    %cst_16 = arith.constant 5.000000e-01 : f32
    %53 = vector.broadcast %cst_16 : f32 to vector<64x128xf32>
    %54 = arith.mulf %53, %52 : vector<64x128xf32>
    %55 = arith.addf %51, %54 : vector<64x128xf32>
    %cst_17 = arith.constant 0.000000e+00 : f32
    %56 = vector.broadcast %cst_17 : f32 to vector<64x128xf32>
    %57 = arith.subf %56, %55 : vector<64x128xf32>
    %58 = vector.shape_cast %57 : vector<64x128xf32> to vector<8x8x128xf32>
    %cst_18 = arith.constant dense<0.000000e+00> : vector<8x128xf32>
    %59 = vector.multi_reduction <add>, %58, %cst_18 [0] : vector<8x8x128xf32> to vector<8x128xf32>
    %60 = arith.addf %40, %59 : vector<8x128xf32>
    %c3_i32 = arith.constant 3 : i32
    %c64_i32_19 = arith.constant 64 : i32
    %61 = arith.muli %c3_i32, %c64_i32_19 : i32
    %62 = tpu.assume_multiple %61, 64 : i32
    %63 = arith.index_cast %62 : i32 to index
    %c0_20 = arith.constant 0 : index
    %64 = vector.load %arg1[%63, %c0_20] : memref<256x128xf32, #tpu.memory_space<vmem>>, vector<64x128xf32>
    %65 = arith.index_cast %62 : i32 to index
    %c0_21 = arith.constant 0 : index
    %66 = vector.load %arg2[%65, %c0_21] : memref<256x128xf32, #tpu.memory_space<vmem>>, vector<64x128xf32>
    %67 = arith.index_cast %62 : i32 to index
    %c0_22 = arith.constant 0 : index
    %68 = vector.load %arg3[%67, %c0_22] : memref<256x128xf32, #tpu.memory_space<vmem>>, vector<64x128xf32>
    %69 = arith.subf %68, %64 : vector<64x128xf32>
    %70 = arith.divf %69, %66 : vector<64x128xf32>
    %71 = math.log %66 : vector<64x128xf32>
    %72 = arith.mulf %70, %70 : vector<64x128xf32>
    %cst_23 = arith.constant 5.000000e-01 : f32
    %73 = vector.broadcast %cst_23 : f32 to vector<64x128xf32>
    %74 = arith.mulf %73, %72 : vector<64x128xf32>
    %75 = arith.addf %71, %74 : vector<64x128xf32>
    %cst_24 = arith.constant 0.000000e+00 : f32
    %76 = vector.broadcast %cst_24 : f32 to vector<64x128xf32>
    %77 = arith.subf %76, %75 : vector<64x128xf32>
    %78 = vector.shape_cast %77 : vector<64x128xf32> to vector<8x8x128xf32>
    %cst_25 = arith.constant dense<0.000000e+00> : vector<8x128xf32>
    %79 = vector.multi_reduction <add>, %78, %cst_25 [0] : vector<8x8x128xf32> to vector<8x128xf32>
    %80 = arith.addf %60, %79 : vector<8x128xf32>
    %c4_i32 = arith.constant 4 : i32
    %c0_26 = arith.constant 0 : index
    %c0_27 = arith.constant 0 : index
    %81 = vector.load %arg4[%c0_26, %c0_27] : memref<8x128xf32, #tpu.memory_space<vmem>>, vector<8x128xf32>
    tpu.vector_store %arg4[%c0_26, %c0_27], %80 {strides = array<i32>} : memref<8x128xf32, #tpu.memory_space<vmem>>, vector<8x128xf32>,
    return
  }
  func.func @transform_0(%arg0: i32) -> (i32, i32) {
    %c0_i32 = arith.constant 0 : i32
    %c0_i32_0 = arith.constant 0 : i32
    return %arg0, %c0_i32 : i32, i32
  }
  func.func @transform_1(%arg0: i32) -> (i32, i32) {
    %c0_i32 = arith.constant 0 : i32
    %c0_i32_0 = arith.constant 0 : i32
    return %arg0, %c0_i32 : i32, i32
  }
  func.func @transform_2(%arg0: i32) -> (i32, i32) {
    %c0_i32 = arith.constant 0 : i32
    %c0_i32_0 = arith.constant 0 : i32
    return %arg0, %c0_i32 : i32, i32
  }
  func.func @transform_3(%arg0: i32) -> (i32, i32) {
    %c0_i32 = arith.constant 0 : i32
    %c0_i32_0 = arith.constant 0 : i32
    return %arg0, %c0_i32 : i32, i32
  }
}

</mosaic_0001>

<llo_original>
// kernel: tpu_custom_call.1
$region0: #{tpu_custom_call.1}
  #allocation0 [shape = 'u32[]', space=smem, size = 0x4, offset = 0x4, fixed_abs, tag = 'smem constant byte address 0x4 - core index']
  #allocation1 [shape = 'u32[144,128]{1,0:T(1,128)}', space=vmem, size = 0x12000, scoped, tag = 'internal scratch']
  %s0 = inlined_call_operand.hbm [shape: f32[256,128], index: 0, kind: input, shape index: {}]
  %s1 = inlined_call_operand.hbm [shape: f32[256,128], index: 1, kind: input, shape index: {}]
  %s2 = inlined_call_operand.hbm [shape: f32[256,128], index: 2, kind: input, shape index: {}]
  %s3 = inlined_call_operand.hbm [shape: f32[8,128], index: 3, kind: output, shape index: {}]
  %s4 = sld [smem:[#allocation0]]
  $region34: #{tpu_custom_call.1} parent=0
    _
  %s6 = ssub.s32 1, %s4
  %s7 = scalar_select 0, %s6, %s4
  $region1: #{tpu_custom_call.1} parent=0
    #allocation2 [shape = 'u8[131072]{0}', space=vmem, size = 0x20000, scoped, tag = 'input window, operand 0, single buffered']
    #allocation3 [shape = 's32[1]{0}', space=sflag, size = 0x4, scoped, tag = 'scoped memory for tpu_custom_call.1']
    #allocation4 [shape = 's32[1]{0}', space=sflag, size = 0x4, scoped, tag = 'scoped memory for tpu_custom_call.1']
    #allocation5 [shape = 'u8[131072]{0}', space=vmem, size = 0x20000, scoped, tag = 'input window, operand 1, single buffered']
    #allocation6 [shape = 's32[1]{0}', space=sflag, size = 0x4, scoped, tag = 'scoped memory for tpu_custom_call.1']
    #allocation7 [shape = 'u8[131072]{0}', space=vmem, size = 0x20000, scoped, tag = 'input window, operand 2, single buffered']
    #allocation8 [shape = 'u8[4096]{0}', space=vmem, size = 0x1000, scoped, tag = 'output window, operand 0, single buffered']
    %8 = vsyncpa [#allocation3], 0
    %9 = vsyncpa [#allocation6], 0
    %10 = vsyncpa [#allocation4], 0
    // Predicated region
    $region2: #{tpu_custom_call.1} parent=1 // pred_check
      _
    $region3: #{tpu_custom_call.1} parent=1 // pred_check_branch
      %12 = sbr.rel (0) target = $region5
    $region4: #{tpu_custom_call.1} parent=1 // pred_region
      %s14 = ssub.s32 4096, 4096
      %15 = vsyncadd [#allocation3], %s14
      %s16 = sshll.u32 [#allocation2], 4
      %s17 = int_to_ptr.vmem [resolvable:$true] %s16
      %22 = dma.hbm_to_vmem [thread:$0]  %s0, 4096, %s17, [#allocation3], 128, 128, 8
    $region5: #{tpu_custom_call.1} parent=1 // pred_fallthru
      _
    // Predicated region
    $region6: #{tpu_custom_call.1} parent=1 // pred_check
      _
    $region7: #{tpu_custom_call.1} parent=1 // pred_check_branch
      %24 = sbr.rel (0) target = $region9
    $region8: #{tpu_custom_call.1} parent=1 // pred_region
      %s26 = ssub.s32 4096, 4096
      %27 = vsyncadd [#allocation6], %s26
      %s28 = sshll.u32 [#allocation5], 4
      %s29 = int_to_ptr.vmem [resolvable:$true] %s28
      %34 = dma.hbm_to_vmem [thread:$0]  %s1, 4096, %s29, [#allocation6], 128, 128, 8
    $region9: #{tpu_custom_call.1} parent=1 // pred_fallthru
      _
    // Predicated region
    $region10: #{tpu_custom_call.1} parent=1 // pred_check
      _
    $region11: #{tpu_custom_call.1} parent=1 // pred_check_branch
      %36 = sbr.rel (0) target = $region13
    $region12: #{tpu_custom_call.1} parent=1 // pred_region
      %s38 = ssub.s32 4096, 4096
      %39 = vsyncadd [#allocation6], %s38
      %s40 = sshll.u32 [#allocation7], 4
      %s41 = int_to_ptr.vmem [resolvable:$true] %s40
      %46 = dma.hbm_to_vmem [thread:$0]  %s2, 4096, %s41, [#allocation6], 128, 128, 8
    $region13: #{tpu_custom_call.1} parent=1 // pred_fallthru
      _
    // Predicated region
    $region14: #{tpu_custom_call.1} parent=1 // pred_check
      _
    $region15: #{tpu_custom_call.1} parent=1 // pred_check_branch
      %48 = sbr.rel (0) target = $region17
    $region16: #{tpu_custom_call.1} parent=1 // pred_region
      %49 = dma.done [#allocation3], 4096
    $region17: #{tpu_custom_call.1} parent=1 // pred_fallthru
      _
    // Predicated region
    $region18: #{tpu_custom_call.1} parent=1 // pred_check
      _
    $region19: #{tpu_custom_call.1} parent=1 // pred_check_branch
      %51 = sbr.rel (0) target = $region21
    $region20: #{tpu_custom_call.1} parent=1 // pred_region
      %52 = dma.done [#allocation6], 4096
    $region21: #{tpu_custom_call.1} parent=1 // pred_fallthru
      _
    // Predicated region
    $region22: #{tpu_custom_call.1} parent=1 // pred_check
      _
    $region23: #{tpu_custom_call.1} parent=1 // pred_check_branch
      %54 = sbr.rel (0) target = $region25
    $region24: #{tpu_custom_call.1} parent=1 // pred_region
      %55 = dma.done [#allocation6], 4096
    $region25: #{tpu_custom_call.1} parent=1 // pred_fallthru
      _
    %v56 = vld [vmem:[#allocation2] sm:$0xff]
    %v57 = vld [vmem:[#allocation2 + $0x8] sm:$0xff]
    %v58 = vld [vmem:[#allocation2 + $0x10] sm:$0xff]
    %v59 = vld [vmem:[#allocation2 + $0x18] sm:$0xff]
    %v60 = vld [vmem:[#allocation2 + $0x20] sm:$0xff]
    %v61 = vld [vmem:[#allocation2 + $0x28] sm:$0xff]
    %v62 = vld [vmem:[#allocation2 + $0x30] sm:$0xff]
    %v63 = vld [vmem:[#allocation2 + $0x38] sm:$0xff]
    %v64 = vld [vmem:[#allocation5] sm:$0xff]
    %v65 = vld [vmem:[#allocation5 + $0x8] sm:$0xff]
    %v66 = vld [vmem:[#allocation5 + $0x10] sm:$0xff]
    %v67 = vld [vmem:[#allocation5 + $0x18] sm:$0xff]
    %v68 = vld [vmem:[#allocation5 + $0x20] sm:$0xff]
    %v69 = vld [vmem:[#allocation5 + $0x28] sm:$0xff]
    %v70 = vld [vmem:[#allocation5 + $0x30] sm:$0xff]
    %v71 = vld [vmem:[#allocation5 + $0x38] sm:$0xff]
    %v72 = vld [vmem:[#allocation7] sm:$0xff]
    %v73 = vld [vmem:[#allocation7 + $0x8] sm:$0xff]
    %v74 = vld [vmem:[#allocation7 + $0x10] sm:$0xff]
    %v75 = vld [vmem:[#allocation7 + $0x18] sm:$0xff]
    %v76 = vld [vmem:[#allocation7 + $0x20] sm:$0xff]
    %v77 = vld [vmem:[#allocation7 + $0x28] sm:$0xff]
    %v78 = vld [vmem:[#allocation7 + $0x30] sm:$0xff]
    %v79 = vld [vmem:[#allocation7 + $0x38] sm:$0xff]
    %v80 = vsub.f32 %v72, %v56
    %v81 = vsub.f32 %v73, %v57
    %v82 = vsub.f32 %v74, %v58
    %v83 = vsub.f32 %v75, %v59
    %v84 = vsub.f32 %v76, %v60
    %v85 = vsub.f32 %v77, %v61
    %v86 = vsub.f32 %v78, %v62
    %v87 = vsub.f32 %v79, %v63
    %v88 = vrcp.pop %v64
    %v89 = vmul.f32 %v80, %v88
    %v90 = vrcp.pop %v65
    %v91 = vmul.f32 %v81, %v90
    %v92 = vrcp.pop %v66
    %v93 = vmul.f32 %v82, %v92
    %v94 = vrcp.pop %v67
    %v95 = vmul.f32 %v83, %v94
    %v96 = vrcp.pop %v68
    %v97 = vmul.f32 %v84, %v96
    %v98 = vrcp.pop %v69
    %v99 = vmul.f32 %v85, %v98
    %v100 = vrcp.pop %v70
    %v101 = vmul.f32 %v86, %v100
    %v102 = vrcp.pop %v71
    %v103 = vmul.f32 %v87, %v102
    %v104 = vlog2.pop %v64
    %v105 = vmul.f32 %v104, 0.6931472
    %v106 = vlog2.pop %v65
    %v107 = vmul.f32 %v106, 0.6931472
    %v108 = vlog2.pop %v66
    %v109 = vmul.f32 %v108, 0.6931472
    %v110 = vlog2.pop %v67
    %v111 = vmul.f32 %v110, 0.6931472
    %v112 = vlog2.pop %v68
    %v113 = vmul.f32 %v112, 0.6931472
    %v114 = vlog2.pop %v69
    %v115 = vmul.f32 %v114, 0.6931472
    %v116 = vlog2.pop %v70
    %v117 = vmul.f32 %v116, 0.6931472
    %v118 = vlog2.pop %v71
    %v119 = vmul.f32 %v118, 0.6931472
    %v120 = vmul.f32 %v89, %v89
    %v121 = vmul.f32 %v91, %v91
    %v122 = vmul.f32 %v93, %v93
    %v123 = vmul.f32 %v95, %v95
    %v124 = vmul.f32 %v97, %v97
    %v125 = vmul.f32 %v99, %v99
    %v126 = vmul.f32 %v101, %v101
    %v127 = vmul.f32 %v103, %v103
    %v128 = vmul.f32 %v120, 0.5
    %v129 = vmul.f32 %v121, 0.5
    %v130 = vmul.f32 %v122, 0.5
    %v131 = vmul.f32 %v123, 0.5
    %v132 = vmul.f32 %v124, 0.5
    %v133 = vmul.f32 %v125, 0.5
    %v134 = vmul.f32 %v126, 0.5
    %v135 = vmul.f32 %v127, 0.5
    %v136 = vadd.f32 %v105, %v128
    %v137 = vadd.f32 %v107, %v129
    %v138 = vadd.f32 %v109, %v130
    %v139 = vadd.f32 %v111, %v131
    %v140 = vadd.f32 %v113, %v132
    %v141 = vadd.f32 %v115, %v133
    %v142 = vadd.f32 %v117, %v134
    %v143 = vadd.f32 %v119, %v135
    %v144 = vsub.f32 0.0, %v136
    %v145 = vsub.f32 0.0, %v137
    %v146 = vsub.f32 0.0, %v138
    %v147 = vsub.f32 0.0, %v139
    %v148 = vsub.f32 0.0, %v140
    %v149 = vsub.f32 0.0, %v141
    %v150 = vsub.f32 0.0, %v142
    %v151 = vsub.f32 0.0, %v143
    %v152 = vadd.f32 %v144, %v145
    %v153 = vadd.f32 %v152, %v146
    %v154 = vadd.f32 %v153, %v147
    %v155 = vadd.f32 %v154, %v148
    %v156 = vadd.f32 %v155, %v149
    %v157 = vadd.f32 %v156, %v150
    %v158 = vadd.f32 %v157, %v151
    %v159 = vadd.f32 %v158, 0.0
    %s160 = scalar_lea.vmem [#allocation2], 64
    %v161 = vld [vmem:[%s160] sm:$0xff]
    %v162 = vld [vmem:[%s160 + $0x8] sm:$0xff]
    %v163 = vld [vmem:[%s160 + $0x10] sm:$0xff]
    %v164 = vld [vmem:[%s160 + $0x18] sm:$0xff]
    %v165 = vld [vmem:[%s160 + $0x20] sm:$0xff]
    %v166 = vld [vmem:[%s160 + $0x28] sm:$0xff]
    %v167 = vld [vmem:[%s160 + $0x30] sm:$0xff]
    %v168 = vld [vmem:[%s160 + $0x38] sm:$0xff]
    %s169 = scalar_lea.vmem [#allocation5], 64
    %v170 = vld [vmem:[%s169] sm:$0xff]
    %v171 = vld [vmem:[%s169 + $0x8] sm:$0xff]
    %v172 = vld [vmem:[%s169 + $0x10] sm:$0xff]
    %v173 = vld [vmem:[%s169 + $0x18] sm:$0xff]
    %v174 = vld [vmem:[%s169 + $0x20] sm:$0xff]
    %v175 = vld [vmem:[%s169 + $0x28] sm:$0xff]
    %v176 = vld [vmem:[%s169 + $0x30] sm:$0xff]
    %v177 = vld [vmem:[%s169 + $0x38] sm:$0xff]
    %s178 = scalar_lea.vmem [#allocation7], 64
    %v179 = vld [vmem:[%s178] sm:$0xff]
    %v180 = vld [vmem:[%s178 + $0x8] sm:$0xff]
    %v181 = vld [vmem:[%s178 + $0x10] sm:$0xff]
    %v182 = vld [vmem:[%s178 + $0x18] sm:$0xff]
    %v183 = vld [vmem:[%s178 + $0x20] sm:$0xff]
    %v184 = vld [vmem:[%s178 + $0x28] sm:$0xff]
    %v185 = vld [vmem:[%s178 + $0x30] sm:$0xff]
    %v186 = vld [vmem:[%s178 + $0x38] sm:$0xff]
    %v187 = vsub.f32 %v179, %v161
    %v188 = vsub.f32 %v180, %v162
    %v189 = vsub.f32 %v181, %v163
    %v190 = vsub.f32 %v182, %v164
    %v191 = vsub.f32 %v183, %v165
    %v192 = vsub.f32 %v184, %v166
    %v193 = vsub.f32 %v185, %v167
    %v194 = vsub.f32 %v186, %v168
    %v195 = vrcp.pop %v170
    %v196 = vmul.f32 %v187, %v195
    %v197 = vrcp.pop %v171
    %v198 = vmul.f32 %v188, %v197
    %v199 = vrcp.pop %v172
    %v200 = vmul.f32 %v189, %v199
    %v201 = vrcp.pop %v173
    %v202 = vmul.f32 %v190, %v201
    %v203 = vrcp.pop %v174
    %v204 = vmul.f32 %v191, %v203
    %v205 = vrcp.pop %v175
    %v206 = vmul.f32 %v192, %v205
    %v207 = vrcp.pop %v176
    %v208 = vmul.f32 %v193, %v207
    %v209 = vrcp.pop %v177
    %v210 = vmul.f32 %v194, %v209
    %v211 = vlog2.pop %v170
    %v212 = vmul.f32 %v211, 0.6931472
    %v213 = vlog2.pop %v171
    %v214 = vmul.f32 %v213, 0.6931472
    %v215 = vlog2.pop %v172
    %v216 = vmul.f32 %v215, 0.6931472
    %v217 = vlog2.pop %v173
    %v218 = vmul.f32 %v217, 0.6931472
    %v219 = vlog2.pop %v174
    %v220 = vmul.f32 %v219, 0.6931472
    %v221 = vlog2.pop %v175
    %v222 = vmul.f32 %v221, 0.6931472
    %v223 = vlog2.pop %v176
    %v224 = vmul.f32 %v223, 0.6931472
    %v225 = vlog2.pop %v177
    %v226 = vmul.f32 %v225, 0.6931472
    %v227 = vmul.f32 %v196, %v196
    %v228 = vmul.f32 %v198, %v198
    %v229 = vmul.f32 %v200, %v200
    %v230 = vmul.f32 %v202, %v202
    %v231 = vmul.f32 %v204, %v204
    %v232 = vmul.f32 %v206, %v206
    %v233 = vmul.f32 %v208, %v208
    %v234 = vmul.f32 %v210, %v210
    %v235 = vmul.f32 %v227, 0.5
    %v236 = vmul.f32 %v228, 0.5
    %v237 = vmul.f32 %v229, 0.5
    %v238 = vmul.f32 %v230, 0.5
    %v239 = vmul.f32 %v231, 0.5
    %v240 = vmul.f32 %v232, 0.5
    %v241 = vmul.f32 %v233, 0.5
    %v242 = vmul.f32 %v234, 0.5
    %v243 = vadd.f32 %v212, %v235
    %v244 = vadd.f32 %v214, %v236
    %v245 = vadd.f32 %v216, %v237
    %v246 = vadd.f32 %v218, %v238
    %v247 = vadd.f32 %v220, %v239
    %v248 = vadd.f32 %v222, %v240
    %v249 = vadd.f32 %v224, %v241
    %v250 = vadd.f32 %v226, %v242
    %v251 = vsub.f32 0.0, %v243
    %v252 = vsub.f32 0.0, %v244
    %v253 = vsub.f32 0.0, %v245
    %v254 = vsub.f32 0.0, %v246
    %v255 = vsub.f32 0.0, %v247
    %v256 = vsub.f32 0.0, %v248
    %v257 = vsub.f32 0.0, %v249
    %v258 = vsub.f32 0.0, %v250
    %v259 = vadd.f32 %v251, %v252
    %v260 = vadd.f32 %v259, %v253
    %v261 = vadd.f32 %v260, %v254
    %v262 = vadd.f32 %v261, %v255
    %v263 = vadd.f32 %v262, %v256
    %v264 = vadd.f32 %v263, %v257
    %v265 = vadd.f32 %v264, %v258
    %v266 = vadd.f32 %v159, %v265
    %s267 = scalar_lea.vmem [#allocation2], 128
    %v268 = vld [vmem:[%s267] sm:$0xff]
    %v269 = vld [vmem:[%s267 + $0x8] sm:$0xff]
    %v270 = vld [vmem:[%s267 + $0x10] sm:$0xff]
    %v271 = vld [vmem:[%s267 + $0x18] sm:$0xff]
    %v272 = vld [vmem:[%s267 + $0x20] sm:$0xff]
    %v273 = vld [vmem:[%s267 + $0x28] sm:$0xff]
    %v274 = vld [vmem:[%s267 + $0x30] sm:$0xff]
    %v275 = vld [vmem:[%s267 + $0x38] sm:$0xff]
    %s276 = scalar_lea.vmem [#allocation5], 128
    %v277 = vld [vmem:[%s276] sm:$0xff]
    %v278 = vld [vmem:[%s276 + $0x8] sm:$0xff]
    %v279 = vld [vmem:[%s276 + $0x10] sm:$0xff]
    %v280 = vld [vmem:[%s276 + $0x18] sm:$0xff]
    %v281 = vld [vmem:[%s276 + $0x20] sm:$0xff]
    %v282 = vld [vmem:[%s276 + $0x28] sm:$0xff]
    %v283 = vld [vmem:[%s276 + $0x30] sm:$0xff]
    %v284 = vld [vmem:[%s276 + $0x38] sm:$0xff]
    %s285 = scalar_lea.vmem [#allocation7], 128
    %v286 = vld [vmem:[%s285] sm:$0xff]
    %v287 = vld [vmem:[%s285 + $0x8] sm:$0xff]
    %v288 = vld [vmem:[%s285 + $0x10] sm:$0xff]
    %v289 = vld [vmem:[%s285 + $0x18] sm:$0xff]
    %v290 = vld [vmem:[%s285 + $0x20] sm:$0xff]
    %v291 = vld [vmem:[%s285 + $0x28] sm:$0xff]
    %v292 = vld [vmem:[%s285 + $0x30] sm:$0xff]
    %v293 = vld [vmem:[%s285 + $0x38] sm:$0xff]
    %v294 = vsub.f32 %v286, %v268
    %v295 = vsub.f32 %v287, %v269
    %v296 = vsub.f32 %v288, %v270
    %v297 = vsub.f32 %v289, %v271
    %v298 = vsub.f32 %v290, %v272
    %v299 = vsub.f32 %v291, %v273
    %v300 = vsub.f32 %v292, %v274
    %v301 = vsub.f32 %v293, %v275
    %v302 = vrcp.pop %v277
    %v303 = vmul.f32 %v294, %v302
    %v304 = vrcp.pop %v278
    %v305 = vmul.f32 %v295, %v304
    %v306 = vrcp.pop %v279
    %v307 = vmul.f32 %v296, %v306
    %v308 = vrcp.pop %v280
    %v309 = vmul.f32 %v297, %v308
    %v310 = vrcp.pop %v281
    %v311 = vmul.f32 %v298, %v310
    %v312 = vrcp.pop %v282
    %v313 = vmul.f32 %v299, %v312
    %v314 = vrcp.pop %v283
    %v315 = vmul.f32 %v300, %v314
    %v316 = vrcp.pop %v284
    %v317 = vmul.f32 %v301, %v316
    %v318 = vlog2.pop %v277
    %v319 = vmul.f32 %v318, 0.6931472
    %v320 = vlog2.pop %v278
    %v321 = vmul.f32 %v320, 0.6931472
    %v322 = vlog2.pop %v279
    %v323 = vmul.f32 %v322, 0.6931472
    %v324 = vlog2.pop %v280
    %v325 = vmul.f32 %v324, 0.6931472
    %v326 = vlog2.pop %v281
    %v327 = vmul.f32 %v326, 0.6931472
    %v328 = vlog2.pop %v282
    %v329 = vmul.f32 %v328, 0.6931472
    %v330 = vlog2.pop %v283
    %v331 = vmul.f32 %v330, 0.6931472
    %v332 = vlog2.pop %v284
    %v333 = vmul.f32 %v332, 0.6931472
    %v334 = vmul.f32 %v303, %v303
    %v335 = vmul.f32 %v305, %v305
    %v336 = vmul.f32 %v307, %v307
    %v337 = vmul.f32 %v309, %v309
    %v338 = vmul.f32 %v311, %v311
    %v339 = vmul.f32 %v313, %v313
    %v340 = vmul.f32 %v315, %v315
    %v341 = vmul.f32 %v317, %v317
    %v342 = vmul.f32 %v334, 0.5
    %v343 = vmul.f32 %v335, 0.5
    %v344 = vmul.f32 %v336, 0.5
    %v345 = vmul.f32 %v337, 0.5
    %v346 = vmul.f32 %v338, 0.5
    %v347 = vmul.f32 %v339, 0.5
    %v348 = vmul.f32 %v340, 0.5
    %v349 = vmul.f32 %v341, 0.5
    %v350 = vadd.f32 %v319, %v342
    %v351 = vadd.f32 %v321, %v343
    %v352 = vadd.f32 %v323, %v344
    %v353 = vadd.f32 %v325, %v345
    %v354 = vadd.f32 %v327, %v346
    %v355 = vadd.f32 %v329, %v347
    %v356 = vadd.f32 %v331, %v348
    %v357 = vadd.f32 %v333, %v349
    %v358 = vsub.f32 0.0, %v350
    %v359 = vsub.f32 0.0, %v351
    %v360 = vsub.f32 0.0, %v352
    %v361 = vsub.f32 0.0, %v353
    %v362 = vsub.f32 0.0, %v354
    %v363 = vsub.f32 0.0, %v355
    %v364 = vsub.f32 0.0, %v356
    %v365 = vsub.f32 0.0, %v357
    %v366 = vadd.f32 %v358, %v359
    %v367 = vadd.f32 %v366, %v360
    %v368 = vadd.f32 %v367, %v361
    %v369 = vadd.f32 %v368, %v362
    %v370 = vadd.f32 %v369, %v363
    %v371 = vadd.f32 %v370, %v364
    %v372 = vadd.f32 %v371, %v365
    %v373 = vadd.f32 %v266, %v372
    %s374 = scalar_lea.vmem [#allocation2], 192
    %v375 = vld [vmem:[%s374] sm:$0xff]
    %v376 = vld [vmem:[%s374 + $0x8] sm:$0xff]
    %v377 = vld [vmem:[%s374 + $0x10] sm:$0xff]
    %v378 = vld [vmem:[%s374 + $0x18] sm:$0xff]
    %v379 = vld [vmem:[%s374 + $0x20] sm:$0xff]
    %v380 = vld [vmem:[%s374 + $0x28] sm:$0xff]
    %v381 = vld [vmem:[%s374 + $0x30] sm:$0xff]
    %v382 = vld [vmem:[%s374 + $0x38] sm:$0xff]
    %s383 = scalar_lea.vmem [#allocation5], 192
    %v384 = vld [vmem:[%s383] sm:$0xff]
    %v385 = vld [vmem:[%s383 + $0x8] sm:$0xff]
    %v386 = vld [vmem:[%s383 + $0x10] sm:$0xff]
    %v387 = vld [vmem:[%s383 + $0x18] sm:$0xff]
    %v388 = vld [vmem:[%s383 + $0x20] sm:$0xff]
    %v389 = vld [vmem:[%s383 + $0x28] sm:$0xff]
    %v390 = vld [vmem:[%s383 + $0x30] sm:$0xff]
    %v391 = vld [vmem:[%s383 + $0x38] sm:$0xff]
    %s392 = scalar_lea.vmem [#allocation7], 192
    %v393 = vld [vmem:[%s392] sm:$0xff]
    %v394 = vld [vmem:[%s392 + $0x8] sm:$0xff]
    %v395 = vld [vmem:[%s392 + $0x10] sm:$0xff]
    %v396 = vld [vmem:[%s392 + $0x18] sm:$0xff]
    %v397 = vld [vmem:[%s392 + $0x20] sm:$0xff]
    %v398 = vld [vmem:[%s392 + $0x28] sm:$0xff]
    %v399 = vld [vmem:[%s392 + $0x30] sm:$0xff]
    %v400 = vld [vmem:[%s392 + $0x38] sm:$0xff]
    %v401 = vsub.f32 %v393, %v375
    %v402 = vsub.f32 %v394, %v376
    %v403 = vsub.f32 %v395, %v377
    %v404 = vsub.f32 %v396, %v378
    %v405 = vsub.f32 %v397, %v379
    %v406 = vsub.f32 %v398, %v380
    %v407 = vsub.f32 %v399, %v381
    %v408 = vsub.f32 %v400, %v382
    %v409 = vrcp.pop %v384
    %v410 = vmul.f32 %v401, %v409
    %v411 = vrcp.pop %v385
    %v412 = vmul.f32 %v402, %v411
    %v413 = vrcp.pop %v386
    %v414 = vmul.f32 %v403, %v413
    %v415 = vrcp.pop %v387
    %v416 = vmul.f32 %v404, %v415
    %v417 = vrcp.pop %v388
    %v418 = vmul.f32 %v405, %v417
    %v419 = vrcp.pop %v389
    %v420 = vmul.f32 %v406, %v419
    %v421 = vrcp.pop %v390
    %v422 = vmul.f32 %v407, %v421
    %v423 = vrcp.pop %v391
    %v424 = vmul.f32 %v408, %v423
    %v425 = vlog2.pop %v384
    %v426 = vmul.f32 %v425, 0.6931472
    %v427 = vlog2.pop %v385
    %v428 = vmul.f32 %v427, 0.6931472
    %v429 = vlog2.pop %v386
    %v430 = vmul.f32 %v429, 0.6931472
    %v431 = vlog2.pop %v387
    %v432 = vmul.f32 %v431, 0.6931472
    %v433 = vlog2.pop %v388
    %v434 = vmul.f32 %v433, 0.6931472
    %v435 = vlog2.pop %v389
    %v436 = vmul.f32 %v435, 0.6931472
    %v437 = vlog2.pop %v390
    %v438 = vmul.f32 %v437, 0.6931472
    %v439 = vlog2.pop %v391
    %v440 = vmul.f32 %v439, 0.6931472
    %v441 = vmul.f32 %v410, %v410
    %v442 = vmul.f32 %v412, %v412
    %v443 = vmul.f32 %v414, %v414
    %v444 = vmul.f32 %v416, %v416
    %v445 = vmul.f32 %v418, %v418
    %v446 = vmul.f32 %v420, %v420
    %v447 = vmul.f32 %v422, %v422
    %v448 = vmul.f32 %v424, %v424
    %v449 = vmul.f32 %v441, 0.5
    %v450 = vmul.f32 %v442, 0.5
    %v451 = vmul.f32 %v443, 0.5
    %v452 = vmul.f32 %v444, 0.5
    %v453 = vmul.f32 %v445, 0.5
    %v454 = vmul.f32 %v446, 0.5
    %v455 = vmul.f32 %v447, 0.5
    %v456 = vmul.f32 %v448, 0.5
    %v457 = vadd.f32 %v426, %v449
    %v458 = vadd.f32 %v428, %v450
    %v459 = vadd.f32 %v430, %v451
    %v460 = vadd.f32 %v432, %v452
    %v461 = vadd.f32 %v434, %v453
    %v462 = vadd.f32 %v436, %v454
    %v463 = vadd.f32 %v438, %v455
    %v464 = vadd.f32 %v440, %v456
    %v465 = vsub.f32 0.0, %v457
    %v466 = vsub.f32 0.0, %v458
    %v467 = vsub.f32 0.0, %v459
    %v468 = vsub.f32 0.0, %v460
    %v469 = vsub.f32 0.0, %v461
    %v470 = vsub.f32 0.0, %v462
    %v471 = vsub.f32 0.0, %v463
    %v472 = vsub.f32 0.0, %v464
    %v473 = vadd.f32 %v465, %v466
    %v474 = vadd.f32 %v473, %v467
    %v475 = vadd.f32 %v474, %v468
    %v476 = vadd.f32 %v475, %v469
    %v477 = vadd.f32 %v476, %v470
    %v478 = vadd.f32 %v477, %v471
    %v479 = vadd.f32 %v478, %v472
    %v480 = vadd.f32 %v373, %v479
    %481 = vst [vmem:[#allocation8] sm:$0xff] %v480
    // Predicated region
    $region26: #{tpu_custom_call.1} parent=1 // pred_check
      _
    $region27: #{tpu_custom_call.1} parent=1 // pred_check_branch
      %483 = sbr.rel (0) target = $region29
    $region28: #{tpu_custom_call.1} parent=1 // pred_region
      %s485 = ssub.s32 128, 128
      %486 = vsyncadd [#allocation4], %s485
      %s488 = sshll.u32 [#allocation8], 4
      %s489 = int_to_ptr.vmem [resolvable:$true] %s488
      %491 = dma.vmem_to_hbm [thread:$0]  %s489, 128, %s3, [#allocation4]
    $region29: #{tpu_custom_call.1} parent=1 // pred_fallthru
      _
    // Predicated region
    $region30: #{tpu_custom_call.1} parent=1 // pred_check
      _
    $region31: #{tpu_custom_call.1} parent=1 // pred_check_branch
      %493 = sbr.rel (0) target = $region33
    $region32: #{tpu_custom_call.1} parent=1 // pred_region
      %494 = dma.done [#allocation4], 128
    $region33: #{tpu_custom_call.1} parent=1 // pred_fallthru
      _
    %495 = vsyncpa [#allocation3], 1
    %496 = vsyncpa [#allocation6], 1
    %497 = vsyncpa [#allocation4], 1

</llo_original>
